<compile_context>
chip_gen: v5e
topology: v5e:2x2
jax: 0.10.0
libtpu: 0.0.40
codegen_flags: <defaults>
</compile_context>

<pallas_src>
import functools

import jax
import jax.numpy as jnp
from jax import lax
from jax.experimental import pallas as pl
from jax.experimental.pallas import tpu as pltpu


_VMEM_TILE_BUDGET = 44 * 1024 * 1024   # target tile working set (fits v7x 64 MiB/TC)
_VMEM_LIMIT_BYTES = 56 * 1024 * 1024   # explicit scoped-VMEM limit for both calls


def _round_up(x: int, m: int) -> int:
    return ((x + m - 1) // m) * m


def _layernorm_kernel(h_ref, g_ref, b_ref, y_ref, *, eps):
    # h_ref: (TM, D) hidden tile; g_ref/b_ref: (1, D); y_ref: (TM, D) bf16 output.
    x = h_ref[...].astype(jnp.float32)
    mu = jnp.mean(x, axis=-1, keepdims=True)
    xc = x - mu
    var = jnp.mean(xc * xc, axis=-1, keepdims=True)          # biased var (torch LN)
    inv = lax.rsqrt(var + eps)                                # EUP rsqrt
    y_ref[...] = (xc * inv * g_ref[...] + b_ref[...]).astype(y_ref.dtype)


def _logits_kernel(y_ref, w_ref, b_ref, o_ref):
    # y_ref: (TM, D) bf16; w_ref: (D, TN) bf16; b_ref: (1, TN) f32; o_ref: (TM, TN) f32.
    o_ref[...] = (
        jnp.dot(y_ref[...], w_ref[...], preferred_element_type=jnp.float32)
        + b_ref[...]
    )


def prepare_causal_lm_head_params(weight, bias, *, tn=512, param_dtype=jnp.bfloat16):
    """One-time (parameter-load-time) prep: pad vocab to a tile multiple,
    transpose to (D, Vp) for the MXU, and cast to bf16.  Do NOT call per step."""
    V, D = weight.shape
    tn = min(tn, _round_up(V, 128))
    Vp = _round_up(V, tn)                                     # multiple of 128
    w_t = jnp.pad(weight, ((0, Vp - V), (0, 0))).T.astype(param_dtype)      # (D, Vp)
    b_row = jnp.pad(bias, (0, Vp - V)).reshape(1, Vp).astype(jnp.float32)   # (1, Vp)
    return w_t, b_row


def causal_lm_head_forward(hidden_states, gamma, beta, w_t, bias_row, vocab_size,
                           *, eps=1e-5, tm=512, tn=512):
    """Equivalent of CausalLMHead.forward: LN + Linear(vocab) -> f32 logits.

    hidden_states: (..., D)
    gamma, beta  : (D,)
    w_t, bias_row: outputs of prepare_causal_lm_head_params  ((D, Vp), (1, Vp))
    returns      : (..., vocab_size) float32
    """
    orig_shape = hidden_states.shape
    D = orig_shape[-1]
    Dw, Vp = w_t.shape
    assert Dw == D, (Dw, D)
    V = vocab_size

    x = hidden_states.reshape(-1, D)                          # (T, D)
    T = x.shape[0]

    w_bytes = jnp.dtype(w_t.dtype).itemsize
    h_bytes = jnp.dtype(x.dtype).itemsize

    # --- tile selection ----------------------------------------------------
    tm = max(8, min(tm, _round_up(T, 8)))
    tn = min(tn, Vp)
    while tn > 128 and Vp % tn:
        tn //= 2
    if Vp % tn:
        tn = 128                                              # Vp is a multiple of 128

    def working_set(tm_, tn_):
        # double-buffered inputs/outputs of whichever pass is larger
        ln = 2 * tm_ * D * h_bytes + 2 * tm_ * D * w_bytes + 4 * D * 4
        gemm = (2 * tm_ * D * w_bytes + 2 * D * tn_ * w_bytes
                + 2 * tn_ * 4 + 2 * tm_ * tn_ * 4)
        return max(ln, gemm)

    while working_set(tm, tn) > _VMEM_TILE_BUDGET and tn > 128:
        tn //= 2                                              # keeps Vp % tn == 0
    while working_set(tm, tn) > _VMEM_TILE_BUDGET and tm > 8:
        tm = _round_up(max(8, tm // 2), 8)

    Tp = _round_up(T, tm)
    if Tp != T:
        x = jnp.pad(x, ((0, Tp - T), (0, 0)))                 # cheap: only activations

    g_row = gamma.reshape(1, D).astype(jnp.float32)
    be_row = beta.reshape(1, D).astype(jnp.float32)

    # --- pass 1: LayerNorm -> bf16 activations (computed once per token) ---
    y = pl.pallas_call(
        functools.partial(_layernorm_kernel, eps=float(eps)),
        out_shape=jax.ShapeDtypeStruct((Tp, D), w_t.dtype),
        grid=(Tp // tm,),
        in_specs=[
            pl.BlockSpec((tm, D), lambda i: (i, 0)),
            pl.BlockSpec((1, D), lambda i: (0, 0)),
            pl.BlockSpec((1, D), lambda i: (0, 0)),
        ],
        out_specs=pl.BlockSpec((tm, D), lambda i: (i, 0)),
        compiler_params=pltpu.CompilerParams(
            dimension_semantics=("parallel",),
            vmem_limit_bytes=_VMEM_LIMIT_BYTES),
    )(x, g_row, be_row)

    # --- pass 2: logits GEMM (bf16 MXU, f32 accumulate/output) --------------
    grid = (Tp // tm, Vp // tn)
    cost = pl.CostEstimate(
        flops=2 * Tp * D * Vp,
        transcendentals=0,
        bytes_accessed=(Tp * D * w_bytes                      # bf16 activations
                        + (Tp // tm) * D * Vp * w_bytes       # streamed weight passes
                        + Tp * Vp * 4),                       # f32 logits
    )
    out = pl.pallas_call(
        _logits_kernel,
        out_shape=jax.ShapeDtypeStruct((Tp, Vp), jnp.float32),
        grid=grid,
        in_specs=[
            pl.BlockSpec((tm, D), lambda i, j: (i, 0)),       # resident across vocab sweep
            pl.BlockSpec((D, tn), lambda i, j: (0, j)),       # weight tile streams over j
            pl.BlockSpec((1, tn), lambda i, j: (0, j)),       # bias tile
        ],
        out_specs=pl.BlockSpec((tm, tn), lambda i, j: (i, j)),
        compiler_params=pltpu.CompilerParams(
            dimension_semantics=("parallel", "parallel"),
            vmem_limit_bytes=_VMEM_LIMIT_BYTES),
        cost_estimate=cost,
    )(y, w_t, bias_row)

    return out[:T, :V].reshape(*orig_shape[:-1], V)


def _reference(hidden, gamma, beta, weight, bias, eps, *, w_dtype=jnp.float32):
    """Torch-like reference; optionally mimics the kernel's bf16 operand rounding."""
    x = hidden.astype(jnp.float32)
    mu = jnp.mean(x, axis=-1, keepdims=True)
    var = jnp.mean((x - mu) ** 2, axis=-1, keepdims=True)
    y = (x - mu) * lax.rsqrt(var + eps) * gamma + beta
    if w_dtype != jnp.float32:
        y = y.astype(w_dtype).astype(jnp.float32)
    w = weight.astype(w_dtype).astype(jnp.float32)
    logits = jnp.dot(y, w.T, precision=lax.Precision.HIGHEST) + bias
    return logits.astype(jnp.float32)


if __name__ == "__main__":
    # Small synthetic config (PretrainedConfig analogue).
    n_embd = 32
    vocab_size = 128
    layer_norm_epsilon = 1e-5
    B, S = 2, 8

    key = jax.random.PRNGKey(0)
    k_h, k_w, k_b, k_g, k_be = jax.random.split(key, 5)

    hidden = jax.random.normal(k_h, (B, S, n_embd), dtype=jnp.float32)
    weight = jax.random.normal(k_w, (vocab_size, n_embd), dtype=jnp.float32) * 0.02
    bias = jax.random.normal(k_b, (vocab_size,), dtype=jnp.float32) * 0.02
    gamma = 1.0 + 0.01 * jax.random.normal(k_g, (n_embd,), dtype=jnp.float32)
    beta = 0.01 * jax.random.normal(k_be, (n_embd,), dtype=jnp.float32)

    # One-time parameter prep (transpose / pad / bf16 cast happens here, not per call).
    w_t, b_row = prepare_causal_lm_head_params(weight, bias, param_dtype=jnp.bfloat16)

    logits = causal_lm_head_forward(hidden, gamma, beta, w_t, b_row, vocab_size,
                                    eps=layer_norm_epsilon)
    logits = jax.block_until_ready(logits)

    ref_bf16 = _reference(hidden, gamma, beta, weight, bias, layer_norm_epsilon,
                          w_dtype=jnp.bfloat16)
    ref_f32 = _reference(hidden, gamma, beta, weight, bias, layer_norm_epsilon,
                         w_dtype=jnp.float32)

    assert logits.shape == (B, S, vocab_size), logits.shape
    assert logits.dtype == jnp.float32, logits.dtype
    assert jnp.allclose(logits, ref_bf16, atol=2e-3, rtol=2e-2), \
        "mismatch vs bf16 mixed-precision LN+Linear reference"
    assert jnp.allclose(logits, ref_f32, atol=2e-2, rtol=2e-2), \
        "mismatch vs f32 LN+Linear reference"

    print("KERNEL_OK")
</pallas_src>

<mosaic_0001>
module attributes {stable_mosaic.version = 11 : i64} {
  func.func @_layernorm_kernel(%arg0: i32, %arg1: memref<16x32xf32, #tpu.memory_space<vmem>>, %arg2: memref<1x32xf32, #tpu.memory_space<vmem>>, %arg3: memref<1x32xf32, #tpu.memory_space<vmem>>, %arg4: memref<16x32xbf16, #tpu.memory_space<vmem>>) attributes {dimension_semantics = [#tpu.dimension_semantics<parallel>], iteration_bounds = array<i64: 1>, scalar_prefetch = 0 : i64, scratch_operands = 0 : i64, tpu.core_type = #tpu.core_type<tc>, window_params = [{transform_indices = @transform_0, window_bounds = array<i64: 16, 32>}, {pipeline_mode = #tpu.pipeline_mode<synchronous>, transform_indices = @transform_1, window_bounds = array<i64: 1, 32>}, {pipeline_mode = #tpu.pipeline_mode<synchronous>, transform_indices = @transform_2, window_bounds = array<i64: 1, 32>}, {transform_indices = @transform_3, window_bounds = array<i64: 16, 32>}]} {
    %c0 = arith.constant 0 : index
    %c0_0 = arith.constant 0 : index
    %0 = vector.load %arg1[%c0, %c0_0] : memref<16x32xf32, #tpu.memory_space<vmem>>, vector<16x32xf32>
    %cst = arith.constant dense<0.000000e+00> : vector<16xf32>
    %1 = vector.multi_reduction <add>, %0, %cst [1] : vector<16x32xf32> to vector<16xf32>
    %2 = vector.shape_cast %1 : vector<16xf32> to vector<16x1xf32>
    %cst_1 = arith.constant 3.200000e+01 : f32
    %3 = vector.broadcast %cst_1 : f32 to vector<16x1xf32>
    %4 = arith.divf %2, %3 : vector<16x1xf32>
    %5 = vector.broadcast %4 : vector<16x1xf32> to vector<16x32xf32>
    %6 = arith.subf %0, %5 : vector<16x32xf32>
    %7 = arith.mulf %6, %6 : vector<16x32xf32>
    %cst_2 = arith.constant dense<0.000000e+00> : vector<16xf32>
    %8 = vector.multi_reduction <add>, %7, %cst_2 [1] : vector<16x32xf32> to vector<16xf32>
    %9 = vector.shape_cast %8 : vector<16xf32> to vector<16x1xf32>
    %cst_3 = arith.constant 3.200000e+01 : f32
    %10 = vector.broadcast %cst_3 : f32 to vector<16x1xf32>
    %11 = arith.divf %9, %10 : vector<16x1xf32>
    %cst_4 = arith.constant 9.99999974E-6 : f32
    %12 = vector.broadcast %cst_4 : f32 to vector<16x1xf32>
    %13 = arith.addf %11, %12 : vector<16x1xf32>
    %14 = math.rsqrt %13 : vector<16x1xf32>
    %15 = vector.broadcast %14 : vector<16x1xf32> to vector<16x32xf32>
    %16 = arith.mulf %6, %15 : vector<16x32xf32>
    %c0_5 = arith.constant 0 : index
    %c0_6 = arith.constant 0 : index
    %17 = vector.load %arg2[%c0_5, %c0_6] : memref<1x32xf32, #tpu.memory_space<vmem>>, vector<1x32xf32>
    %18 = vector.broadcast %17 : vector<1x32xf32> to vector<16x32xf32>
    %19 = arith.mulf %16, %18 : vector<16x32xf32>
    %c0_7 = arith.constant 0 : index
    %c0_8 = arith.constant 0 : index
    %20 = vector.load %arg3[%c0_7, %c0_8] : memref<1x32xf32, #tpu.memory_space<vmem>>, vector<1x32xf32>
    %21 = vector.broadcast %20 : vector<1x32xf32> to vector<16x32xf32>
    %22 = arith.addf %19, %21 : vector<16x32xf32>
    %23 = arith.truncf %22 : vector<16x32xf32> to vector<16x32xbf16>
    %c0_9 = arith.constant 0 : index
    %c0_10 = arith.constant 0 : index
    %24 = vector.load %arg4[%c0_9, %c0_10] : memref<16x32xbf16, #tpu.memory_space<vmem>>, vector<16x32xbf16>
    tpu.vector_store %arg4[%c0_9, %c0_10], %23 {strides = array<i32>} : memref<16x32xbf16, #tpu.memory_space<vmem>>, vector<16x32xbf16>,
    return
  }
  func.func @transform_0(%arg0: i32) -> (i32, i32) {
    %c0_i32 = arith.constant 0 : i32
    %c0_i32_0 = arith.constant 0 : i32
    return %arg0, %c0_i32 : i32, i32
  }
  func.func @transform_1(%arg0: i32) -> (i32, i32) {
    %c0_i32 = arith.constant 0 : i32
    %c0_i32_0 = arith.constant 0 : i32
    %c0_i32_1 = arith.constant 0 : i32
    return %c0_i32, %c0_i32_0 : i32, i32
  }
  func.func @transform_2(%arg0: i32) -> (i32, i32) {
    %c0_i32 = arith.constant 0 : i32
    %c0_i32_0 = arith.constant 0 : i32
    %c0_i32_1 = arith.constant 0 : i32
    return %c0_i32, %c0_i32_0 : i32, i32
  }
  func.func @transform_3(%arg0: i32) -> (i32, i32) {
    %c0_i32 = arith.constant 0 : i32
    %c0_i32_0 = arith.constant 0 : i32
    return %arg0, %c0_i32 : i32, i32
  }
}

</mosaic_0001>

<llo_original>
// kernel: tpu_custom_call.1
$region0: #{tpu_custom_call.1}
  #allocation0 [shape = 'u32[]', space=smem, size = 0x4, offset = 0x4, fixed_abs, tag = 'smem constant byte address 0x4 - core index']
  #allocation1 [shape = 'u32[72,128]{1,0:T(1,128)}', space=vmem, size = 0x9000, scoped, tag = 'internal scratch']
  %s0 = inlined_call_operand.hbm [shape: f32[16,32], index: 0, kind: input, shape index: {}]
  %s1 = inlined_call_operand.hbm [shape: f32[1,32], index: 1, kind: input, shape index: {}]
  %s2 = inlined_call_operand.vmem [shape: f32[1,32], index: 2, kind: input, shape index: {}]
  %s3 = inlined_call_operand.hbm [shape: bf16[16,32], index: 3, kind: output, shape index: {}]
  %s4 = sld [smem:[#allocation0]]
  $region30: #{tpu_custom_call.1} parent=0
    _
  %s6 = ssub.s32 1, %s4
  %s7 = scalar_select 0, %s6, %s4
  $region1: #{tpu_custom_call.1} parent=0
    #allocation2 [shape = 'u8[8192]{0}', space=vmem, size = 0x2000, scoped, tag = 'input window, operand 0, single buffered']
    #allocation3 [shape = 's32[1]{0}', space=sflag, size = 0x4, scoped, tag = 'scoped memory for tpu_custom_call.1']
    #allocation4 [shape = 's32[1]{0}', space=sflag, size = 0x4, scoped, tag = 'scoped memory for tpu_custom_call.1']
    #allocation5 [shape = 'u8[512]{0}', space=vmem, size = 0x400, scoped, tag = 'input window, operand 1, single buffered']
    #allocation6 [shape = 's32[1]{0}', space=sflag, size = 0x4, scoped, tag = 'scoped memory for tpu_custom_call.1']
    #allocation7 [shape = 'u8[4096]{0}', space=vmem, size = 0x1000, scoped, tag = 'output window, operand 0, single buffered']
    %8 = vsyncpa [#allocation3], 0
    %9 = vsyncpa [#allocation6], 0
    %10 = vsyncpa [#allocation4], 0
    // Predicated region
    $region2: #{tpu_custom_call.1} parent=1 // pred_check
      _
    $region3: #{tpu_custom_call.1} parent=1 // pred_check_branch
      %12 = sbr.rel (0) target = $region5
    $region4: #{tpu_custom_call.1} parent=1 // pred_region
      %14 = vsyncadd [#allocation3], 0
      %s15 = sshll.u32 %s0, 4
      %s16 = int_to_ptr.hbm [resolvable:$true] %s15
      %s17 = sshll.u32 [#allocation2], 4
      %s18 = int_to_ptr.vmem [resolvable:$true] %s17
      %23 = dma.hbm_to_vmem [thread:$0]  %s16, 256, %s18, [#allocation3], 128, 128, 8
    $region5: #{tpu_custom_call.1} parent=1 // pred_fallthru
      _
    // Predicated region
    $region6: #{tpu_custom_call.1} parent=1 // pred_check
      _
    $region7: #{tpu_custom_call.1} parent=1 // pred_check_branch
      %25 = sbr.rel (0) target = $region9
    $region8: #{tpu_custom_call.1} parent=1 // pred_region
      %27 = vsyncadd [#allocation6], 0
      %s29 = sshll.u32 %s1, 4
      %s30 = int_to_ptr.hbm [resolvable:$true] %s29
      %s31 = sshll.u32 [#allocation5], 4
      %s32 = int_to_ptr.vmem [resolvable:$true] %s31
      %34 = dma.hbm_to_vmem [thread:$0]  %s30, 16, %s32, [#allocation6]
    $region9: #{tpu_custom_call.1} parent=1 // pred_fallthru
      _
    // Predicated region
    $region10: #{tpu_custom_call.1} parent=1 // pred_check
      _
    $region11: #{tpu_custom_call.1} parent=1 // pred_check_branch
      %36 = sbr.rel (0) target = $region13
    $region12: #{tpu_custom_call.1} parent=1 // pred_region
      _
    $region13: #{tpu_custom_call.1} parent=1 // pred_fallthru
      _
    // Predicated region
    $region14: #{tpu_custom_call.1} parent=1 // pred_check
      _
    $region15: #{tpu_custom_call.1} parent=1 // pred_check_branch
      %38 = sbr.rel (0) target = $region17
    $region16: #{tpu_custom_call.1} parent=1 // pred_region
      %40 = dma.done [#allocation3], 256
    $region17: #{tpu_custom_call.1} parent=1 // pred_fallthru
      _
    // Predicated region
    $region18: #{tpu_custom_call.1} parent=1 // pred_check
      _
    $region19: #{tpu_custom_call.1} parent=1 // pred_check_branch
      %42 = sbr.rel (0) target = $region21
    $region20: #{tpu_custom_call.1} parent=1 // pred_region
      %44 = dma.done [#allocation6], 16
    $region21: #{tpu_custom_call.1} parent=1 // pred_fallthru
      _
    %v45 = vld [vmem:[#allocation2] sm:$0xff]
    %v46 = vld [vmem:[#allocation2 + $0x8] sm:$0xff]
    %vm47 = vcmask 261120
    %v48 = vsel %vm47, %v45, 0.0
    %49 = vadd.xlane.f32.xlu0 %v48
    %v50 = vpop.xlane.xlu0 %49
    %v51 = vsel %vm47, %v46, 0.0
    %52 = vadd.xlane.f32.xlu0 %v51
    %v53 = vpop.xlane.xlu0 %52
    %v54 = vrcp.pop 32.0
    %v55 = vmul.f32 32.0, %v54
    %v56 = vsub.f32 1.0, %v55
    %v57 = vmul.f32 %v54, %v56
    %v58 = vadd.f32 %v54, %v57
    %vm59 = vweird.f32 %v54
    %v60 = vsel %vm59, %v54, %v58
    %v61 = vmul.f32 %v50, %v60
    %v62 = vmul.f32 %v53, %v60
    %v63 = vsub.f32 %v45, %v61
    %v64 = vsub.f32 %v46, %v62
    %v65 = vmul.f32 %v63, %v63
    %v66 = vmul.f32 %v64, %v64
    %v67 = vsel %vm47, %v65, 0.0
    %68 = vadd.xlane.f32.xlu0 %v67
    %v69 = vpop.xlane.xlu0 %68
    %v70 = vsel %vm47, %v66, 0.0
    %71 = vadd.xlane.f32.xlu0 %v70
    %v72 = vpop.xlane.xlu0 %71
    %v73 = vmul.f32 %v69, %v60
    %v74 = vmul.f32 %v72, %v60
    %v75 = vadd.f32 %v73, 1e-05
    %v76 = vadd.f32 %v74, 1e-05
    %v77 = vrsqrt.pop %v75
    %v78 = vmul.f32 %v77, %v75
    %v79 = vmul.f32 %v78, %v77
    %v80 = vmul.f32 0.5, %v79
    %v81 = vsub.f32 1.5, %v80
    %v82 = vmul.f32 %v77, %v81
    %vm83 = vweird.f32 %v75
    %vm84 = vweird.f32 %v77
    %vm85 = vmor %vm83, %vm84
    %v86 = vsel %vm85, %v77, %v82
    %v87 = vrsqrt.pop %v76
    %v88 = vmul.f32 %v87, %v76
    %v89 = vmul.f32 %v88, %v87
    %v90 = vmul.f32 0.5, %v89
    %v91 = vsub.f32 1.5, %v90
    %v92 = vmul.f32 %v87, %v91
    %vm93 = vweird.f32 %v76
    %vm94 = vweird.f32 %v87
    %vm95 = vmor %vm93, %vm94
    %v96 = vsel %vm95, %v87, %v92
    %v97 = vmul.f32 %v63, %v86
    %v98 = vmul.f32 %v64, %v96
    %v99 = vld [vmem:[#allocation5] sm:$0x1]
    %v101 = vperm.slane %v99, 0
    %v103 = vmul.f32 %v97, %v101
    %v104 = vmul.f32 %v98, %v101
    %v105 = vld [vmem:[%s2] sm:$0x1]
    %v107 = vperm.slane %v105, 0
    %v109 = vadd.f32 %v103, %v107
    %v110 = vadd.f32 %v104, %v107
    %v111 = vpack.c.bf16 %v109, %v109
    %v112 = vpack.c.bf16 %v110, %v110
    %vm113 = vcmask 257024
    %114 = vst.msk [vmem:[#allocation7] sm:$0xf] %vm113, %v111
    %115 = vst.msk [vmem:[#allocation7 + $0x4] sm:$0xf] %vm113, %v112
    // Predicated region
    $region22: #{tpu_custom_call.1} parent=1 // pred_check
      _
    $region23: #{tpu_custom_call.1} parent=1 // pred_check_branch
      %117 = sbr.rel (0) target = $region25
    $region24: #{tpu_custom_call.1} parent=1 // pred_region
      %119 = vsyncadd [#allocation4], 0
      %s120 = sshll.u32 [#allocation7], 4
      %s121 = int_to_ptr.vmem [resolvable:$true] %s120
      %s122 = sshll.u32 %s3, 4
      %s123 = int_to_ptr.hbm [resolvable:$true] %s122
      %128 = dma.vmem_to_hbm [thread:$0]  %s121, 128, %s123, [#allocation4], 64, 64, 4
    $region25: #{tpu_custom_call.1} parent=1 // pred_fallthru
      _
    // Predicated region
    $region26: #{tpu_custom_call.1} parent=1 // pred_check
      _
    $region27: #{tpu_custom_call.1} parent=1 // pred_check_branch
      %130 = sbr.rel (0) target = $region29
    $region28: #{tpu_custom_call.1} parent=1 // pred_region
      %132 = dma.done [#allocation4], 128
    $region29: #{tpu_custom_call.1} parent=1 // pred_fallthru
      _
    %133 = vsyncpa [#allocation3], 1
    %134 = vsyncpa [#allocation6], 1
    %135 = vsyncpa [#allocation4], 1

</llo_original>
